<compile_context>
chip_gen: v5e
topology: v5e:2x2
jax: 0.10.0
libtpu: 0.0.40
codegen_flags: <defaults>
</compile_context>

<pallas_src>
import functools

import jax
import jax.numpy as jnp
import numpy as np
from jax.experimental import pallas as pl
from jax.experimental.pallas import tpu as pltpu


def _make_kernel(height, width, threshold, num_classes, rows_pad):
    """Builds the post-processing kernel with all scalars baked in as literals."""
    c = int(num_classes)
    # Plain Python floats -> jaxpr literals (NOT captured constant arrays).
    w_f = float(width)
    h_f = float(height)
    thr_f = float(threshold)
    # NOTE: diverges from the PyTorch reference when C == 1 (reference divides
    # by zero -> inf); guarded here deliberately.
    inv_denom = 1.0 / float(max(c - 1, 1))
    rows_out = 6 + c                      # 4 clipped + (C+1) probs + keep
    tail_rows = rows_pad - rows_out

    def kernel(in_ref, out_ref):
        n_lanes = in_ref.shape[1]

        slab = in_ref[...]                           # ONE (8, Np) load
        xs = slab[0:2, :]                            # x1, x2
        ys = slab[2:4, :]                            # y1, y2
        scores = slab[4:5, :]                        # (1, Np) f32
        labels_i = slab[5:6, :].astype(jnp.int32)    # exact for small ints

        # ---- Boxes.clip(size): x coords to [0, W], y coords to [0, H] ----
        xs_c = jnp.clip(xs, 0.0, w_f)
        ys_c = jnp.clip(ys, 0.0, h_f)

        # ---- probs (transposed, thing-class rows only) ----
        # probs[j, i] = (1 - s_i) / (C - 1); probs[label_i, i] = s_i;
        # background row (index C) stays 0.
        base = (1.0 - scores) * inv_denom                       # (1, Np)
        row_ids = jax.lax.broadcasted_iota(jnp.int32, (c, n_lanes), 0)
        probs_rows = jnp.where(row_ids == labels_i, scores, base)   # (c, Np)

        # ---- threshold mask as 1.0 / 0.0 row ----
        keep_row = (scores >= thr_f).astype(jnp.float32)        # (1, Np)

        # Traced zero row (avoids concrete-array constants in the kernel).
        zero_row = scores * 0.0
        pieces = [xs_c, ys_c, probs_rows, zero_row, keep_row]
        if tail_rows > 0:
            pieces.append(jnp.broadcast_to(zero_row, (tail_rows, n_lanes)))

        # ONE full, unmasked slab store (no partial vst.msk, no zero-fill pass).
        out_ref[...] = jnp.concatenate(pieces, axis=0)

    return kernel


@functools.partial(
    jax.jit, static_argnames=("height", "width", "threshold", "num_classes"))
def gdino_postprocess(boxes, scores, labels, *, height, width, threshold,
                      num_classes):
    """Pallas wrapper reproducing the numeric part of GDINO1_5_API.forward.

    Returns (clipped_boxes (N,4), probs (N,C+1), keep (N,) bool).
    """
    n = boxes.shape[0]
    c = int(num_classes)
    n_pad = pl.cdiv(max(n, 1), 128) * 128          # lane dim: multiple of 128
    rows_out = 6 + c                               # 4 clipped + (C+1) probs + keep
    rows_pad = pl.cdiv(rows_out, 8) * 8            # sublane dim: multiple of 8

    boxes_f = boxes.astype(jnp.float32)
    # Lane-dense fused input slab: rows [x1, x2, y1, y2, score, label, 0, 0].
    rows = jnp.stack(
        [boxes_f[:, 0], boxes_f[:, 2], boxes_f[:, 1], boxes_f[:, 3],
         scores.reshape(n).astype(jnp.float32),
         labels.reshape(n).astype(jnp.float32)], axis=0)          # (6, N)
    in_slab = jnp.pad(rows, ((0, 2), (0, n_pad - n)))             # (8, Np)

    out_slab = pl.pallas_call(
        _make_kernel(height, width, threshold, c, rows_pad),
        out_shape=jax.ShapeDtypeStruct((rows_pad, n_pad), jnp.float32),
        in_specs=[pl.BlockSpec(memory_space=pltpu.MemorySpace.VMEM)],
        out_specs=pl.BlockSpec(memory_space=pltpu.MemorySpace.VMEM),
    )(in_slab)

    # Unpack the fused slab back to module-shaped outputs.
    clipped = jnp.stack(
        [out_slab[0, :n], out_slab[2, :n], out_slab[1, :n], out_slab[3, :n]],
        axis=1)                                    # (N, 4) [x1, y1, x2, y2]
    probs = out_slab[4:5 + c, :n].T                # (N, C+1), bg col == 0
    keep = out_slab[5 + c, :n] > 0.5               # (N,) bool
    return clipped, probs, keep


if __name__ == "__main__":
    # ---- deterministic synthetic "API detection results" (no checkpoint / no net) ----
    key = jax.random.PRNGKey(0)
    k1, k2, k3 = jax.random.split(key, 3)

    N = 8                   # detections returned by the (synthetic) API
    C = 4                   # number of thing classes
    HEIGHT, WIDTH = 16, 20  # distinct so x/y clipping is exercised separately
    THRESHOLD = 0.25

    # boxes roughly in [-2, 24] so some coordinates get clipped to the image size
    boxes = jax.random.uniform(k1, (N, 4), minval=-2.0, maxval=24.0,
                               dtype=jnp.float32)
    scores = jax.random.uniform(k2, (N,), minval=0.0, maxval=1.0,
                                dtype=jnp.float32)
    labels = jax.random.randint(k3, (N,), 0, C, dtype=jnp.int32)

    clipped, probs, keep = gdino_postprocess(
        boxes, scores, labels,
        height=HEIGHT, width=WIDTH, threshold=THRESHOLD, num_classes=C)
    jax.block_until_ready((clipped, probs, keep))

    # ---- numpy reference (mirrors the PyTorch forward) ----
    b_np = np.asarray(boxes, dtype=np.float32)
    s_np = np.asarray(scores, dtype=np.float32)
    l_np = np.asarray(labels, dtype=np.int64)

    probs_ref = np.zeros((N, C + 1), dtype=np.float32)
    for i in range(N):
        probs_ref[i, :-1] = (1.0 - s_np[i]) / (C - 1)
        probs_ref[i, l_np[i]] = s_np[i]
    clipped_ref = b_np.copy()
    clipped_ref[:, 0::2] = np.clip(clipped_ref[:, 0::2], 0.0, WIDTH)
    clipped_ref[:, 1::2] = np.clip(clipped_ref[:, 1::2], 0.0, HEIGHT)
    keep_ref = s_np >= THRESHOLD

    np.testing.assert_allclose(np.asarray(clipped), clipped_ref,
                               rtol=1e-6, atol=1e-6)
    np.testing.assert_allclose(np.asarray(probs), probs_ref,
                               rtol=1e-6, atol=1e-6)
    np.testing.assert_array_equal(np.asarray(keep), keep_ref)

    # Dynamic boolean filtering (variable-length output) has no static-shape
    # Pallas equivalent; it is applied on host, exactly as the PyTorch module does.
    # TODO(synk): the remote GroundingDINOAPIWrapper.inference call is untranslatable.
    final_boxes = np.asarray(clipped)[keep_ref]
    final_scores = s_np[keep_ref]
    final_labels = l_np[keep_ref]
    final_probs = np.asarray(probs)[keep_ref]
    assert (final_boxes.shape[0] == final_scores.shape[0]
            == final_labels.shape[0] == final_probs.shape[0])

    print("KERNEL_OK")
</pallas_src>

<mosaic_0001>
module attributes {stable_mosaic.version = 11 : i64} {
  func.func @kernel(%arg0: memref<8x128xf32, #tpu.memory_space<vmem>>, %arg1: memref<16x128xf32, #tpu.memory_space<vmem>>) attributes {dimension_semantics = [], scalar_prefetch = 0 : i64, scratch_operands = 0 : i64, tpu.core_type = #tpu.core_type<tc>} {
    %c0 = arith.constant 0 : index
    %c0_0 = arith.constant 0 : index
    %0 = vector.load %arg0[%c0, %c0_0] : memref<8x128xf32, #tpu.memory_space<vmem>>, vector<8x128xf32>
    %1 = vector.extract_strided_slice %0 {offsets = [0, 0], sizes = [2, 128], strides = [1, 1]} : vector<8x128xf32> to vector<2x128xf32>
    %2 = vector.extract_strided_slice %0 {offsets = [2, 0], sizes = [2, 128], strides = [1, 1]} : vector<8x128xf32> to vector<2x128xf32>
    %3 = vector.extract_strided_slice %0 {offsets = [4, 0], sizes = [1, 128], strides = [1, 1]} : vector<8x128xf32> to vector<1x128xf32>
    %4 = vector.extract_strided_slice %0 {offsets = [5, 0], sizes = [1, 128], strides = [1, 1]} : vector<8x128xf32> to vector<1x128xf32>
    %5 = arith.fptosi %4 : vector<1x128xf32> to vector<1x128xi32>
    %cst = arith.constant 0.000000e+00 : f32
    %cst_1 = arith.constant 2.000000e+01 : f32
    %6 = vector.broadcast %cst : f32 to vector<2x128xf32>
    %7 = arith.maximumf %6, %1 : vector<2x128xf32>
    %8 = vector.broadcast %cst_1 : f32 to vector<2x128xf32>
    %9 = arith.minimumf %8, %7 : vector<2x128xf32>
    %cst_2 = arith.constant 0.000000e+00 : f32
    %cst_3 = arith.constant 1.600000e+01 : f32
    %10 = vector.broadcast %cst_2 : f32 to vector<2x128xf32>
    %11 = arith.maximumf %10, %2 : vector<2x128xf32>
    %12 = vector.broadcast %cst_3 : f32 to vector<2x128xf32>
    %13 = arith.minimumf %12, %11 : vector<2x128xf32>
    %cst_4 = arith.constant 1.000000e+00 : f32
    %14 = vector.broadcast %cst_4 : f32 to vector<1x128xf32>
    %15 = arith.subf %14, %3 : vector<1x128xf32>
    %cst_5 = arith.constant 0.333333343 : f32
    %16 = vector.broadcast %cst_5 : f32 to vector<1x128xf32>
    %17 = arith.mulf %15, %16 : vector<1x128xf32>
    %18 = tpu.iota {dimensions = array<i32: 0>} : vector<4x128xi32>
    %19 = vector.broadcast %5 : vector<1x128xi32> to vector<4x128xi32>
    %20 = arith.cmpi eq, %18, %19 : vector<4x128xi32>
    %21 = vector.shape_cast %3 : vector<1x128xf32> to vector<1x128xf32>
    %22 = vector.broadcast %21 : vector<1x128xf32> to vector<4x128xf32>
    %23 = vector.shape_cast %17 : vector<1x128xf32> to vector<1x128xf32>
    %24 = vector.broadcast %23 : vector<1x128xf32> to vector<4x128xf32>
    %25 = arith.select %20, %22, %24 : vector<4x128xi1>, vector<4x128xf32>
    %cst_6 = arith.constant 2.500000e-01 : f32
    %26 = vector.broadcast %cst_6 : f32 to vector<1x128xf32>
    %27 = arith.cmpf oge, %3, %26 : vector<1x128xf32>
    %28 = arith.extui %27 : vector<1x128xi1> to vector<1x128xi32>
    %29 = arith.sitofp %28 : vector<1x128xi32> to vector<1x128xf32>
    %cst_7 = arith.constant 0.000000e+00 : f32
    %30 = vector.broadcast %cst_7 : f32 to vector<1x128xf32>
    %31 = arith.mulf %3, %30 : vector<1x128xf32>
    %32 = vector.shape_cast %31 : vector<1x128xf32> to vector<1x128xf32>
    %33 = vector.broadcast %32 : vector<1x128xf32> to vector<6x128xf32>
    %34 = tpu.concatenate %9, %13, %25, %31, %29, %33 in 0 : vector<2x128xf32>, vector<2x128xf32>, vector<4x128xf32>, vector<1x128xf32>, vector<1x128xf32>, vector<6x128xf32> -> vector<16x128xf32>
    %c0_8 = arith.constant 0 : index
    %c0_9 = arith.constant 0 : index
    %35 = vector.load %arg1[%c0_8, %c0_9] : memref<16x128xf32, #tpu.memory_space<vmem>>, vector<16x128xf32>
    tpu.vector_store %arg1[%c0_8, %c0_9], %34 {strides = array<i32>} : memref<16x128xf32, #tpu.memory_space<vmem>>, vector<16x128xf32>,
    return
  }
}

</mosaic_0001>

<llo_original>
// kernel: gdino_postprocess.1
$region0: #{gdino_postprocess.1}
  #allocation0 [shape = 'u32[]', space=smem, size = 0x4, offset = 0x4, fixed_abs, tag = 'smem constant byte address 0x4 - core index']
  #allocation1 [shape = 'u32[72,128]{1,0:T(1,128)}', space=vmem, size = 0x9000, scoped, tag = 'internal scratch']
  %s0 = inlined_call_operand.vmem [shape: f32[8,128], index: 0, kind: input, shape index: {}]
  %s1 = inlined_call_operand.vmem [shape: f32[16,128], index: 1, kind: output, shape index: {}]
  %s2 = sld [smem:[#allocation0]]
  $region14: #{gdino_postprocess.1} parent=0
    _
  %s4 = ssub.s32 1, %s2
  %s5 = scalar_select 0, %s4, %s2
  // Predicated region
  $region2: #{gdino_postprocess.1} parent=0 // pred_check
    _
  $region3: #{gdino_postprocess.1} parent=0 // pred_check_branch
    %7 = sbr.rel (0) target = $region5
  $region4: #{gdino_postprocess.1} parent=0 // pred_region
    _
  $region5: #{gdino_postprocess.1} parent=0 // pred_fallthru
    _
  %v8 = vld [vmem:[%s0] sm:$0xff]
  %v9 = vcvt.f32.s32.to.zero.pseudo %v8
  %v10 = vmax.f32 %v8, 0.0
  %v11 = vmin.f32 %v10, 20.0
  %v12 = vmin.f32 %v10, 16.0
  %v13 = vsub.f32 1.0, %v8
  %v14 = vmul.f32 %v13, 0.33333334
  %v15 = vlaneseq
  %v16 = vshrl.u32 %v15, 7
  %v17 = vperm.slane %v9, 5
  %vm18 = vcmp.eq.s32.totalorder %v16, %v17
  %v19 = vperm.slane %v8, 4
  %v20 = vperm.slane %v14, 4
  %v21 = vsel %vm18, %v19, %v20
  %vm22 = vcmp.ge.f32.partialorder %v8, 0.25
  %v23 = vsel %vm22, 1, 0
  %v24 = vcvt.s32.f32 %v23
  %v25 = vmul.f32 %v8, 0.0
  %v26 = vperm.slane %v25, 4
  %v28 = vrot.slane %v21, 4
  %v31 = vrot.slane %v25, 4
  %v34 = vrot.slane %v24, 3
  %vm36 = vcmask 1041408
  %v37 = vsel %vm36, %v11, %v12
  %vm38 = vcmask 1043456
  %v39 = vsel %vm38, %v37, %v28
  %vm40 = vcmask 1040384
  %v41 = vsel %vm40, %v31, %v34
  %v42 = vsel %vm36, %v41, %v26
  %43 = vst [vmem:[%s1] sm:$0xff] %v39
  %44 = vst [vmem:[%s1 + $0x8] sm:$0xff] %v42
  // Predicated region
  $region6: #{gdino_postprocess.1} parent=0 // pred_check
    _
  $region7: #{gdino_postprocess.1} parent=0 // pred_check_branch
    %46 = sbr.rel (0) target = $region9
  $region8: #{gdino_postprocess.1} parent=0 // pred_region
    _
  $region9: #{gdino_postprocess.1} parent=0 // pred_fallthru
    _
  // Predicated region
  $region10: #{gdino_postprocess.1} parent=0 // pred_check
    _
  $region11: #{gdino_postprocess.1} parent=0 // pred_check_branch
    %48 = sbr.rel (0) target = $region13
  $region12: #{gdino_postprocess.1} parent=0 // pred_region
    _
  $region13: #{gdino_postprocess.1} parent=0 // pred_fallthru
    _

</llo_original>
